<compile_context>
chip_gen: v7x
topology: tpu7x:2x2x1
jax: 0.10.0
libtpu: 0.0.40
codegen_flags: <defaults>
</compile_context>

<pallas_src>
import jax
import jax.numpy as jnp
from jax.experimental import pallas as pl
from jax.experimental.pallas import tpu as pltpu


def _rezero_kernel(alpha_ref, x_ref, o_ref):
    # alpha lives in SMEM as a (1,) f32 scalar; multiply in promoted precision
    # and cast on store so low-precision activations don't round the parameter
    # before the multiply.
    alpha = alpha_ref[0]
    o_ref[...] = (alpha * x_ref[...]).astype(o_ref.dtype)


def _pick_tile_rows(rows, cols, itemsize, target_block_bytes):
    """Choose a sublane tile height ~target_block_bytes per block."""
    # Whole slab fits in one comfortable block -> full-dim block (always legal,
    # even when rows is not a multiple of 8).
    if rows < 8 or rows * cols * itemsize <= target_block_bytes:
        return rows
    tr = target_block_bytes // (cols * itemsize)
    tr = max(8, (tr // 8) * 8)          # multiple of 8 for sublane alignment
    return min(tr, (rows // 8) * 8)


def _rezero_2d(x2d, alpha_f32, *, tile_rows, cols):
    rows = x2d.shape[0]
    itemsize = x2d.dtype.itemsize
    grid = (pl.cdiv(rows, tile_rows),)
    return pl.pallas_call(
        _rezero_kernel,
        out_shape=jax.ShapeDtypeStruct((rows, cols), x2d.dtype),
        grid_spec=pltpu.PrefetchScalarGridSpec(
            num_scalar_prefetch=0,
            grid=grid,
            in_specs=[
                pl.BlockSpec(memory_space=pltpu.SMEM),              # alpha (1,) f32
                pl.BlockSpec((tile_rows, cols), lambda i: (i, 0)),  # x tile
            ],
            out_specs=pl.BlockSpec((tile_rows, cols), lambda i: (i, 0)),
        ),
        compiler_params=pltpu.CompilerParams(
            dimension_semantics=("parallel",),
        ),
        cost_estimate=pl.CostEstimate(
            flops=rows * cols,
            transcendentals=0,
            bytes_accessed=2 * rows * cols * itemsize,
        ),
    )(alpha_f32, x2d)


def rezero(x: jax.Array, alpha: jax.Array, *,
           target_block_bytes: int = 2 * 1024 * 1024,
           max_cols: int = 2048) -> jax.Array:
    """Compute alpha * x (ReZero forward) with a Pallas TPU kernel.

    x may be any shape; semantics are purely elementwise so it is processed as
    a lane-dense 2D slab.  alpha is a learnable scalar (shape (1,) or ()).
    """
    orig_shape = x.shape
    dtype = x.dtype
    n = x.size
    if n == 0:
        return x

    itemsize = jnp.dtype(dtype).itemsize
    alpha_f32 = jnp.asarray(alpha, dtype=jnp.float32).reshape(1)

    if n % 128 == 0:
        # Fast path: no padding, no extra HBM passes.  Pick the widest
        # power-of-two multiple of 128 (<= max_cols) that divides n.
        cols = 128
        c = 256
        while c <= max_cols and n % c == 0:
            cols = c
            c *= 2
        rows = n // cols
        x2d = x.reshape(rows, cols)
        tile_rows = _pick_tile_rows(rows, cols, itemsize, target_block_bytes)
        out2d = _rezero_2d(x2d, alpha_f32, tile_rows=tile_rows, cols=cols)
        return out2d.reshape(orig_shape)

    # Ragged fallback: one flat pad up to a multiple of (8 * 128), then slice.
    cols = 128
    chunk = 8 * cols
    n_pad = -(-n // chunk) * chunk
    x_flat = jnp.pad(x.reshape(-1), (0, n_pad - n))
    rows = n_pad // cols
    x2d = x_flat.reshape(rows, cols)
    tile_rows = _pick_tile_rows(rows, cols, itemsize, target_block_bytes)
    out2d = _rezero_2d(x2d, alpha_f32, tile_rows=tile_rows, cols=cols)
    return out2d.reshape(-1)[:n].reshape(orig_shape)


if __name__ == "__main__":
    key = jax.random.PRNGKey(0)
    # Small NCHW-like input, consistent with a generic tensor input to ReZero.
    x = jax.random.normal(key, (2, 4, 16, 16), dtype=jnp.float32)

    # ReZero initializes alpha to zero (nn.Parameter(torch.zeros(1))).
    alpha0 = jnp.zeros((1,), dtype=jnp.float32)
    out0 = jax.block_until_ready(rezero(x, alpha0))
    assert out0.shape == x.shape and out0.dtype == x.dtype
    assert jnp.allclose(out0, alpha0 * x, atol=0.0, rtol=0.0)

    # Nonzero alpha to verify the scaling path.
    alpha1 = jnp.array([0.5], dtype=jnp.float32)
    out1 = jax.block_until_ready(rezero(x, alpha1))
    assert jnp.allclose(out1, alpha1 * x, atol=1e-6, rtol=1e-6)

    # bf16 activations: multiply in f32, cast result (PyTorch-style promotion).
    x_bf16 = x.astype(jnp.bfloat16)
    out_bf16 = jax.block_until_ready(rezero(x_bf16, alpha1))
    ref_bf16 = (alpha1 * x_bf16.astype(jnp.float32)).astype(jnp.bfloat16)
    assert out_bf16.dtype == jnp.bfloat16
    assert jnp.array_equal(out_bf16, ref_bf16)

    # Ragged size exercises the padded fallback path.
    x_rag = jax.random.normal(jax.random.PRNGKey(1), (3, 5, 7), dtype=jnp.float32)
    out_rag = jax.block_until_ready(rezero(x_rag, alpha1))
    assert jnp.allclose(out_rag, alpha1 * x_rag, atol=1e-6, rtol=1e-6)

    print("KERNEL_OK")
</pallas_src>

<mosaic_0001>
module attributes {stable_mosaic.version = 11 : i64} {
  func.func @_rezero_kernel(%arg0: i32, %arg1: memref<1xf32, #tpu.memory_space<smem>>, %arg2: memref<1x2048xf32, #tpu.memory_space<vmem>>, %arg3: memref<1x2048xf32, #tpu.memory_space<vmem>>) attributes {dimension_semantics = [#tpu.dimension_semantics<parallel>], iteration_bounds = array<i64: 1>, scalar_prefetch = 0 : i64, scratch_operands = 0 : i64, tpu.core_type = #tpu.core_type<tc>, window_params = [{transform_indices = @transform_0, window_bounds = array<i64: 1>}, {transform_indices = @transform_1, window_bounds = array<i64: 1, 2048>}, {transform_indices = @transform_2, window_bounds = array<i64: 1, 2048>}]} {
    %c0 = arith.constant 0 : index
    %0 = memref.load %arg1[%c0] : memref<1xf32, #tpu.memory_space<smem>>
    %c0_0 = arith.constant 0 : index
    %c0_1 = arith.constant 0 : index
    %1 = vector.load %arg2[%c0_0, %c0_1] : memref<1x2048xf32, #tpu.memory_space<vmem>>, vector<1x2048xf32>
    %2 = vector.broadcast %0 : f32 to vector<1x2048xf32>
    %3 = arith.mulf %2, %1 : vector<1x2048xf32>
    %c0_2 = arith.constant 0 : index
    %c0_3 = arith.constant 0 : index
    %4 = vector.load %arg3[%c0_2, %c0_3] : memref<1x2048xf32, #tpu.memory_space<vmem>>, vector<1x2048xf32>
    tpu.vector_store %arg3[%c0_2, %c0_3], %3 {strides = array<i32>} : memref<1x2048xf32, #tpu.memory_space<vmem>>, vector<1x2048xf32>,
    return
  }
  func.func @transform_0(%arg0: i32) -> i32 {
    %c0_i32 = arith.constant 0 : i32
    %c0_i32_0 = arith.constant 0 : i32
    return %c0_i32 : i32
  }
  func.func @transform_1(%arg0: i32) -> (i32, i32) {
    %c0_i32 = arith.constant 0 : i32
    %c0_i32_0 = arith.constant 0 : i32
    return %arg0, %c0_i32 : i32, i32
  }
  func.func @transform_2(%arg0: i32) -> (i32, i32) {
    %c0_i32 = arith.constant 0 : i32
    %c0_i32_0 = arith.constant 0 : i32
    return %arg0, %c0_i32 : i32, i32
  }
}

</mosaic_0001>

<llo_original>
// kernel: tpu_custom_call.1
$region0: #{tpu_custom_call.1}
  #allocation0 [shape = 'u32[]', space=smem, size = 0x4, offset = 0x4, fixed_abs, tag = 'smem constant byte address 0x4 - core index']
  #allocation1 [shape = 'u32[144,128]{1,0:T(1,128)}', space=vmem, size = 0x12000, scoped, tag = 'internal scratch']
  #allocation2 [shape = 'f32[1]{0:T(128)S(6)}', space=smem, size = 0x200, scoped, tag = 'scoped memory for tpu_custom_call.1']
  %s0 = inlined_call_operand.<no memory space> [shape: f32[1], index: 0, kind: input, shape index: {}]
  %s1 = inlined_call_operand.hbm [shape: f32[1,2048], index: 1, kind: input, shape index: {}]
  %s2 = inlined_call_operand.hbm [shape: f32[1,2048], index: 2, kind: output, shape index: {}]
  %s3 = sld [smem:[#allocation0]]
  $region22: #{tpu_custom_call.1} parent=0
    _
  %s5 = ssub.s32 1, %s3
  %s6 = scalar_select 0, %s5, %s3
  %7 = sst [smem:[#allocation2]] %s0
  $region1: #{tpu_custom_call.1} parent=0
    #allocation3 [shape = 'u8[8192]{0}', space=vmem, size = 0x2000, scoped, tag = 'input window, operand 1, single buffered']
    #allocation4 [shape = 's32[1]{0}', space=sflag, size = 0x4, scoped, tag = 'scoped memory for tpu_custom_call.1']
    #allocation5 [shape = 's32[1]{0}', space=sflag, size = 0x4, scoped, tag = 'scoped memory for tpu_custom_call.1']
    #allocation6 [shape = 'u8[8192]{0}', space=vmem, size = 0x2000, scoped, tag = 'output window, operand 0, single buffered']
    %8 = vsyncpa [#allocation4], 0
    %9 = vsyncpa [#allocation5], 0
    // Predicated region
    $region2: #{tpu_custom_call.1} parent=1 // pred_check
      _
    $region3: #{tpu_custom_call.1} parent=1 // pred_check_branch
      %11 = sbr.rel (0) target = $region5
    $region4: #{tpu_custom_call.1} parent=1 // pred_region
      _
    $region5: #{tpu_custom_call.1} parent=1 // pred_fallthru
      _
    // Predicated region
    $region6: #{tpu_custom_call.1} parent=1 // pred_check
      _
    $region7: #{tpu_custom_call.1} parent=1 // pred_check_branch
      %13 = sbr.rel (0) target = $region9
    $region8: #{tpu_custom_call.1} parent=1 // pred_region
      %s15 = ssub.s32 256, 256
      %16 = vsyncadd [#allocation4], %s15
      %s18 = sshll.u32 [#allocation3], 4
      %s19 = int_to_ptr.vmem [resolvable:$true] %s18
      %21 = dma.hbm_to_vmem [thread:$0]  %s1, 256, %s19, [#allocation4]
    $region9: #{tpu_custom_call.1} parent=1 // pred_fallthru
      _
    // Predicated region
    $region10: #{tpu_custom_call.1} parent=1 // pred_check
      _
    $region11: #{tpu_custom_call.1} parent=1 // pred_check_branch
      %23 = sbr.rel (0) target = $region13
    $region12: #{tpu_custom_call.1} parent=1 // pred_region
      %24 = dma.done [#allocation4], 256
    $region13: #{tpu_custom_call.1} parent=1 // pred_fallthru
      _
    %s25 = sld [smem:[#allocation2]]
    %v26 = vld [vmem:[#allocation3] sm:$0xff]
    %v27 = vld [vmem:[#allocation3 + $0x8] sm:$0xff]
    %v28 = vstv %s25
    %v29 = vmul.f32 %v28, %v26
    %v30 = vmul.f32 %v28, %v27
    %31 = vst [vmem:[#allocation6] sm:$0xff] %v29
    %32 = vst [vmem:[#allocation6 + $0x8] sm:$0xff] %v30
    // Predicated region
    $region14: #{tpu_custom_call.1} parent=1 // pred_check
      _
    $region15: #{tpu_custom_call.1} parent=1 // pred_check_branch
      %34 = sbr.rel (0) target = $region17
    $region16: #{tpu_custom_call.1} parent=1 // pred_region
      %s36 = ssub.s32 256, 256
      %37 = vsyncadd [#allocation5], %s36
      %s39 = sshll.u32 [#allocation6], 4
      %s40 = int_to_ptr.vmem [resolvable:$true] %s39
      %42 = dma.vmem_to_hbm [thread:$0]  %s40, 256, %s2, [#allocation5]
    $region17: #{tpu_custom_call.1} parent=1 // pred_fallthru
      _
    // Predicated region
    $region18: #{tpu_custom_call.1} parent=1 // pred_check
      _
    $region19: #{tpu_custom_call.1} parent=1 // pred_check_branch
      %44 = sbr.rel (0) target = $region21
    $region20: #{tpu_custom_call.1} parent=1 // pred_region
      %45 = dma.done [#allocation5], 256
    $region21: #{tpu_custom_call.1} parent=1 // pred_fallthru
      _
    %46 = vsyncpa [#allocation4], 1
    %47 = vsyncpa [#allocation5], 1

</llo_original>
